<compile_context>
chip_gen: v6e
topology: v6e:2x2x1
jax: 0.10.0
libtpu: 0.0.40
codegen_flags: <defaults>
</compile_context>

<pallas_src>
import math

import jax
import jax.numpy as jnp
from jax.experimental import pallas as pl
from jax.experimental.pallas import tpu as pltpu


def _make_anglenet_kernel(cin, cout):
    """Kernel body for fixed (small) channel counts."""

    def kernel(w_ref, b_ref, x_ref, o_ref):
        # w_ref: SMEM (cout*cin,) f32     b_ref: SMEM (cout,) f32
        # x_ref: VMEM (cin, hw_tile)      o_ref: VMEM (cout, hw_tile)
        for o in range(cout):
            # VPU broadcast-FMAs over the lane-dense spatial axis.
            acc = w_ref[o * cin] * x_ref[0:1, :].astype(jnp.float32)
            for c in range(1, cin):
                acc += w_ref[o * cin + c] * x_ref[c:c + 1, :].astype(jnp.float32)
            acc += b_ref[o]
            # tanh -> EUP; pi-scale -> VPU; lane-dense store.
            o_ref[o:o + 1, :] = (math.pi * jnp.tanh(acc)).astype(o_ref.dtype)

    return kernel


def _pick_hw_tile(hw, cin, itemsize=4, max_block_bytes=2 * 1024 * 1024):
    """Largest legal lane-dense spatial tile (full extent for small inputs)."""
    if hw % 128 != 0 or cin * hw * itemsize <= max_block_bytes:
        return hw  # a full-extent block is always legal
    tile = hw
    while tile % 256 == 0 and cin * tile * itemsize > max_block_bytes:
        tile //= 2  # halving keeps it a multiple of 128 and a divisor of hw
    return tile


def anglenet_forward(x_nchw, weight, bias):
    """pi * tanh(conv1x1(x) + b), computed directly in NCHW.

    x_nchw: (N, C, H, W); weight: (Cout, C, 1, 1); bias: (Cout,).
    """
    N, C, H, W = x_nchw.shape
    Cout = weight.shape[0]
    HW = H * W

    # Pure views / tiny reshapes -- no HBM transposes.
    x_mat = x_nchw.reshape(N, C, HW)
    w_flat = weight.reshape(Cout * C).astype(jnp.float32)
    b_flat = bias.reshape(Cout).astype(jnp.float32)

    hw_tile = _pick_hw_tile(HW, C)
    n_hw = HW // hw_tile

    out = pl.pallas_call(
        _make_anglenet_kernel(C, Cout),
        out_shape=jax.ShapeDtypeStruct((N, Cout, HW), x_nchw.dtype),
        grid_spec=pltpu.PrefetchScalarGridSpec(
            num_scalar_prefetch=0,
            grid=(N, n_hw),
            in_specs=[
                # Tiny params whole in SMEM (scalar path).
                pl.BlockSpec(memory_space=pltpu.MemorySpace.SMEM),
                pl.BlockSpec(memory_space=pltpu.MemorySpace.SMEM),
                # Leading batch dim squeezed; (C, hw_tile) lane-dense block.
                pl.BlockSpec((None, C, hw_tile), lambda n, s: (n, 0, s)),
            ],
            out_specs=pl.BlockSpec((None, Cout, hw_tile),
                                   lambda n, s: (n, 0, s)),
        ),
        compiler_params=pltpu.CompilerParams(
            dimension_semantics=("parallel", "parallel")),
    )(w_flat, b_flat, x_mat)

    # Pure reshape back to NCHW (no transpose).
    return out.reshape(N, Cout, H, W)


if __name__ == "__main__":
    key = jax.random.PRNGKey(0)
    k_x, k_w, k_b = jax.random.split(key, 3)

    N, Cin, H, W = 2, 4, 16, 16
    Cout = 1

    x = jax.random.normal(k_x, (N, Cin, H, W), dtype=jnp.float32)

    # Deterministic parameter init (mimics Conv2d default uniform bound).
    bound = 1.0 / math.sqrt(Cin * 1 * 1)
    weight = jax.random.uniform(k_w, (Cout, Cin, 1, 1),
                                minval=-bound, maxval=bound,
                                dtype=jnp.float32)
    bias = jax.random.uniform(k_b, (Cout,), minval=-bound, maxval=bound,
                              dtype=jnp.float32)

    out = anglenet_forward(x, weight, bias)
    out = jax.block_until_ready(out)

    # Pure-JAX reference (same math, no Pallas).
    ref = math.pi * jnp.tanh(
        jnp.einsum("nchw,oc->nohw", x, weight.reshape(Cout, Cin))
        + bias.reshape(1, Cout, 1, 1))
    assert out.shape == (N, Cout, H, W)
    assert jnp.allclose(out, ref, atol=1e-5, rtol=1e-5)

    print("KERNEL_OK")
</pallas_src>

<mosaic_0001>
module attributes {stable_mosaic.version = 11 : i64} {
  func.func @kernel(%arg0: i32, %arg1: i32, %arg2: memref<4xf32, #tpu.memory_space<smem>>, %arg3: memref<1xf32, #tpu.memory_space<smem>>, %arg4: memref<1x4x256xf32, #tpu.memory_space<vmem>>, %arg5: memref<1x1x256xf32, #tpu.memory_space<vmem>>) attributes {dimension_semantics = [#tpu.dimension_semantics<parallel>, #tpu.dimension_semantics<parallel>], iteration_bounds = array<i64: 2, 1>, scalar_prefetch = 0 : i64, scratch_operands = 0 : i64, tpu.core_type = #tpu.core_type<tc>, window_params = [{transform_indices = @transform_0, window_bounds = array<i64: 4>}, {transform_indices = @transform_1, window_bounds = array<i64: 1>}, {transform_indices = @transform_2, window_bounds = array<i64: 1, 4, 256>}, {transform_indices = @transform_3, window_bounds = array<i64: 1, 1, 256>}]} {
    %c0 = arith.constant 0 : index
    %0 = memref.load %arg2[%c0] : memref<4xf32, #tpu.memory_space<smem>>
    %c0_0 = arith.constant 0 : index
    %c0_1 = arith.constant 0 : index
    %c0_2 = arith.constant 0 : index
    %1 = vector.load %arg4[%c0_0, %c0_1, %c0_2] : memref<1x4x256xf32, #tpu.memory_space<vmem>>, vector<1x1x256xf32>
    %2 = vector.shape_cast %1 : vector<1x1x256xf32> to vector<1x256xf32>
    %3 = vector.broadcast %0 : f32 to vector<1x256xf32>
    %4 = arith.mulf %3, %2 : vector<1x256xf32>
    %c1 = arith.constant 1 : index
    %5 = memref.load %arg2[%c1] : memref<4xf32, #tpu.memory_space<smem>>
    %c0_3 = arith.constant 0 : index
    %c1_4 = arith.constant 1 : index
    %c0_5 = arith.constant 0 : index
    %6 = vector.load %arg4[%c0_3, %c1_4, %c0_5] : memref<1x4x256xf32, #tpu.memory_space<vmem>>, vector<1x1x256xf32>
    %7 = vector.shape_cast %6 : vector<1x1x256xf32> to vector<1x256xf32>
    %8 = vector.broadcast %5 : f32 to vector<1x256xf32>
    %9 = arith.mulf %8, %7 : vector<1x256xf32>
    %10 = arith.addf %4, %9 : vector<1x256xf32>
    %c2 = arith.constant 2 : index
    %11 = memref.load %arg2[%c2] : memref<4xf32, #tpu.memory_space<smem>>
    %c0_6 = arith.constant 0 : index
    %c2_7 = arith.constant 2 : index
    %c0_8 = arith.constant 0 : index
    %12 = vector.load %arg4[%c0_6, %c2_7, %c0_8] : memref<1x4x256xf32, #tpu.memory_space<vmem>>, vector<1x1x256xf32>
    %13 = vector.shape_cast %12 : vector<1x1x256xf32> to vector<1x256xf32>
    %14 = vector.broadcast %11 : f32 to vector<1x256xf32>
    %15 = arith.mulf %14, %13 : vector<1x256xf32>
    %16 = arith.addf %10, %15 : vector<1x256xf32>
    %c3 = arith.constant 3 : index
    %17 = memref.load %arg2[%c3] : memref<4xf32, #tpu.memory_space<smem>>
    %c0_9 = arith.constant 0 : index
    %c3_10 = arith.constant 3 : index
    %c0_11 = arith.constant 0 : index
    %18 = vector.load %arg4[%c0_9, %c3_10, %c0_11] : memref<1x4x256xf32, #tpu.memory_space<vmem>>, vector<1x1x256xf32>
    %19 = vector.shape_cast %18 : vector<1x1x256xf32> to vector<1x256xf32>
    %20 = vector.broadcast %17 : f32 to vector<1x256xf32>
    %21 = arith.mulf %20, %19 : vector<1x256xf32>
    %22 = arith.addf %16, %21 : vector<1x256xf32>
    %c0_12 = arith.constant 0 : index
    %23 = memref.load %arg3[%c0_12] : memref<1xf32, #tpu.memory_space<smem>>
    %24 = vector.broadcast %23 : f32 to vector<1x256xf32>
    %25 = arith.addf %22, %24 : vector<1x256xf32>
    %26 = math.tanh %25 : vector<1x256xf32>
    %cst = arith.constant 3.14159274 : f32
    %27 = vector.broadcast %cst : f32 to vector<1x256xf32>
    %28 = arith.mulf %27, %26 : vector<1x256xf32>
    %c0_13 = arith.constant 0 : index
    %c0_14 = arith.constant 0 : index
    %c0_15 = arith.constant 0 : index
    %29 = vector.load %arg5[%c0_13, %c0_14, %c0_15] : memref<1x1x256xf32, #tpu.memory_space<vmem>>, vector<1x1x256xf32>
    %30 = vector.shape_cast %29 : vector<1x1x256xf32> to vector<1x256xf32>
    %31 = vector.shape_cast %28 : vector<1x256xf32> to vector<1x1x256xf32>
    tpu.vector_store %arg5[%c0_13, %c0_14, %c0_15], %31 {strides = array<i32>} : memref<1x1x256xf32, #tpu.memory_space<vmem>>, vector<1x1x256xf32>,
    return
  }
  func.func @transform_0(%arg0: i32, %arg1: i32) -> i32 {
    %c0_i32 = arith.constant 0 : i32
    %c0_i32_0 = arith.constant 0 : i32
    return %c0_i32 : i32
  }
  func.func @transform_1(%arg0: i32, %arg1: i32) -> i32 {
    %c0_i32 = arith.constant 0 : i32
    %c0_i32_0 = arith.constant 0 : i32
    return %c0_i32 : i32
  }
  func.func @transform_2(%arg0: i32, %arg1: i32) -> (i32, i32, i32) {
    %c0_i32 = arith.constant 0 : i32
    %c0_i32_0 = arith.constant 0 : i32
    return %arg0, %c0_i32, %arg1 : i32, i32, i32
  }
  func.func @transform_3(%arg0: i32, %arg1: i32) -> (i32, i32, i32) {
    %c0_i32 = arith.constant 0 : i32
    %c0_i32_0 = arith.constant 0 : i32
    return %arg0, %c0_i32, %arg1 : i32, i32, i32
  }
}

</mosaic_0001>

<llo_original>
// kernel: tpu_custom_call.1
$region0: #{tpu_custom_call.1}
  #allocation0 [shape = 'u32[]', space=smem, size = 0x4, offset = 0x4, fixed_abs, tag = 'smem constant byte address 0x4 - core index']
  #allocation1 [shape = 'u32[144,128]{1,0:T(1,128)}', space=vmem, size = 0x12000, scoped, tag = 'internal scratch']
  #allocation2 [shape = 'f32[1]{0:T(128)S(6)}', space=smem, size = 0x200, scoped, tag = 'scoped memory for tpu_custom_call.1']
  %s0 = inlined_call_operand.vmem [shape: f32[4], index: 0, kind: input, shape index: {}]
  %s1 = inlined_call_operand.<no memory space> [shape: f32[1], index: 1, kind: input, shape index: {}]
  %s2 = inlined_call_operand.hbm [shape: f32[2,4,256], index: 2, kind: input, shape index: {}]
  %s3 = inlined_call_operand.hbm [shape: f32[2,1,256], index: 3, kind: output, shape index: {}]
  %s4 = sld [smem:[#allocation0]]
  $region53: #{tpu_custom_call.1} parent=0
    _
  %s6 = ssub.s32 1, %s4
  %s7 = scalar_select 0, %s6, %s4
  %8 = sst [smem:[#allocation2]] %s1
  $region1: #{tpu_custom_call.1} parent=0
    #allocation3 [shape = 'u8[512]{0}', space=smem, size = 0x200, scoped, tag = 'input window, operand 0, single buffered']
    #allocation4 [shape = 's32[2]{0}', space=sflag, size = 0x8, scoped, tag = 'scoped memory for tpu_custom_call.1']
    #allocation5 [shape = 's32[2]{0}', space=sflag, size = 0x8, scoped, tag = 'scoped memory for tpu_custom_call.1']
    #allocation6 [shape = 's32[2]{0}', space=sflag, size = 0x8, scoped, tag = 'scoped memory for tpu_custom_call.1']
    #allocation7 [shape = 'u8[8192]{0}', space=vmem, size = 0x2000, scoped, tag = 'input window, operand 2']
    #allocation8 [shape = 'u8[2048]{0}', space=vmem, size = 0x800, scoped, tag = 'output window, operand 0']
    %9 = vsyncpa [#allocation6], 0
    %10 = vsyncpa [#allocation4], 0
    %s11 = scalar_lea.sflag [#allocation4], 1
    %12 = vsyncpa %s11, 0
    %13 = vsyncpa [#allocation5], 0
    %s14 = scalar_lea.sflag [#allocation5], 1
    %15 = vsyncpa %s14, 0
    loop: start=0, step=1, limit=4
    $region2: #{tpu_custom_call.1} parent=1 // loop_pre_header
      _
    $region3: #{tpu_custom_call.1} parent=1 // loop_header
      %s17 = sphi 0, %s21
      %p18 = scmp.ge.s32.totalorder %s17, 4
      %s24 = sphi 0, %s36
      %s25 = sphi 0, %s32
      %s26 = sphi 0, %s24
      %s27 = sphi 0, %s25
      %s28 = sphi 0, %s26
      %s29 = sphi 0, %s27
      %s37 = sphi 0, %s37
      %s39 = sphi 0, %s37
      %s40 = sphi 0, %s39
      %s54 = sphi 0, %s40
      %s58 = sphi 0, %s58
      %s60 = sphi 0, %s58
      %s61 = sphi 0, %s60
      %s75 = sphi 0, %s61
      %s83 = sphi 0, %s85
      %s86 = sphi 0, %s83
      %s87 = sphi 0, %s86
      %s103 = sphi 0, %s87
      %s111 = sphi 0, %s113
      %s114 = sphi 0, %s111
      %s115 = sphi 0, %s114
      %s131 = sphi 0, %s115
    $region4: #{tpu_custom_call.1} parent=1 // loop_header_branch
      %20 = sbr.rel (%p18) target = $region8
    $region5: #{tpu_custom_call.1} parent=1 // loop_body
      %s22 = ssub.s32 %s17, 1
      %s23 = ssub.s32 %s17, 2
      %s30 = sadd.s32 1, %s25
      %p31 = scmp.ge.s32.totalorder %s30, 1
      %s32 = scalar_select %p31, 0, %s30
      %s33 = sadd.s32 1, %s24
      %s34 = scalar_select %p31, %s33, %s24
      %p35 = scmp.ge.s32.totalorder %s34, 2
      %s36 = scalar_select %p35, 0, %s34
      %s38 = sadd.s32 %s37, 1
      %p41 = scmp.eq.s32.totalorder %s17, 1
      %p42 = scmp.ne.s32.totalorder %s37, %s39
      %p43 = scmp.eq.s32.totalorder %s17, 0
      %p44 = por %p42, %p43
      %p45 = scmp.ne.s32.totalorder %s37, %s39
      %p46 = scmp.eq.s32.totalorder %s22, 1
      %p47 = por %p45, %p46
      %p48 = scmp.ne.s32.totalorder %s39, %s40
      %p49 = scmp.eq.s32.totalorder %s22, 0
      %p50 = por %p48, %p49
      %p51 = scmp.ne.s32.totalorder %s39, %s40
      %p52 = scmp.eq.s32.totalorder %s23, 1
      %p53 = por %p51, %p52
      %p55 = scmp.ne.s32.totalorder %s40, %s54
      %p56 = scmp.eq.s32.totalorder %s23, 0
      %p57 = por %p55, %p56
      %s59 = sadd.s32 %s58, 1
      %p62 = scmp.eq.s32.totalorder %s17, 1
      %p63 = scmp.ne.s32.totalorder %s58, %s60
      %p64 = scmp.eq.s32.totalorder %s17, 0
      %p65 = por %p63, %p64
      %p66 = scmp.ne.s32.totalorder %s58, %s60
      %p67 = scmp.eq.s32.totalorder %s22, 1
      %p68 = por %p66, %p67
      %p69 = scmp.ne.s32.totalorder %s60, %s61
      %p70 = scmp.eq.s32.totalorder %s22, 0
      %p71 = por %p69, %p70
      %p72 = scmp.ne.s32.totalorder %s60, %s61
      %p73 = scmp.eq.s32.totalorder %s23, 1
      %p74 = por %p72, %p73
      %p76 = scmp.ne.s32.totalorder %s61, %s75
      %p77 = scmp.eq.s32.totalorder %s23, 0
      %p78 = por %p76, %p77
      %s79 = ssub.s32 %s24, %s36
      %s80 = ssub.s32 %s25, %s32
      %s81 = sor.u32 %s79, %s80
      %p82 = scmp.eq.s32.totalorder %s81, 0
      %s84 = sadd.s32 %s83, 1
      %s85 = scalar_select %p82, %s83, %s84
      %p88 = pneg %p82
      %p89 = scmp.eq.s32.totalorder %s17, 1
      %p90 = por %p88, %p89
      %p91 = scmp.ne.s32.totalorder %s83, %s86
      %p92 = scmp.eq.s32.totalorder %s17, 0
      %p93 = por %p91, %p92
      %p94 = scmp.ne.s32.totalorder %s83, %s86
      %p95 = scmp.eq.s32.totalorder %s22, 1
      %p96 = por %p94, %p95
      %p97 = scmp.ne.s32.totalorder %s86, %s87
      %p98 = scmp.eq.s32.totalorder %s22, 0
      %p99 = por %p97, %p98
      %p100 = scmp.ne.s32.totalorder %s86, %s87
      %p101 = scmp.eq.s32.totalorder %s23, 1
      %p102 = por %p100, %p101
      %p104 = scmp.ne.s32.totalorder %s87, %s103
      %p105 = scmp.eq.s32.totalorder %s23, 0
      %p106 = por %p104, %p105
      %s107 = ssub.s32 %s24, %s36
      %s108 = ssub.s32 %s25, %s32
      %s109 = sor.u32 %s107, %s108
      %p110 = scmp.eq.s32.totalorder %s109, 0
      %s112 = sadd.s32 %s111, 1
      %s113 = scalar_select %p110, %s111, %s112
      %p116 = pneg %p110
      %p117 = scmp.eq.s32.totalorder %s17, 1
      %p118 = por %p116, %p117
      %p119 = scmp.ne.s32.totalorder %s111, %s114
      %p120 = scmp.eq.s32.totalorder %s17, 0
      %p121 = por %p119, %p120
      %p122 = scmp.ne.s32.totalorder %s111, %s114
      %p123 = scmp.eq.s32.totalorder %s22, 1
      %p124 = por %p122, %p123
      %p125 = scmp.ne.s32.totalorder %s114, %s115
      %p126 = scmp.eq.s32.totalorder %s22, 0
      %p127 = por %p125, %p126
      %p128 = scmp.ne.s32.totalorder %s114, %s115
      %p129 = scmp.eq.s32.totalorder %s23, 1
      %p130 = por %p128, %p129
      %p132 = scmp.ne.s32.totalorder %s115, %s131
      %p133 = scmp.eq.s32.totalorder %s23, 0
      %p134 = por %p132, %p133
      %p135 = scmp.le.s32.totalorder 1, %s17
      %p136 = scmp.lt.s32.totalorder %s17, 3
      %p137 = pnand %p135, %p136
      %p138 = pneg %p137
      // Predicated region
      $region9: #{tpu_custom_call.1} parent=5 // pred_check
        _
      $region10: #{tpu_custom_call.1} parent=5 // pred_check_branch
        %140 = sbr.rel (%p137) target = $region12
      $region11: #{tpu_custom_call.1} parent=5 // pred_region
        %s141 = ssub.s32 %s17, 1
        // Predicated region
        $region13: #{tpu_custom_call.1} parent=11 // pred_check
          %p142 = pneg %p50
        $region14: #{tpu_custom_call.1} parent=11 // pred_check_branch
          %144 = sbr.rel (%p142) target = $region16
        $region15: #{tpu_custom_call.1} parent=11 // pred_region
          %s146 = ssub.s32 16, 16
          %147 = vsyncadd [#allocation6], %s146
          %s149 = sshll.u32 %s0, 4
          %s150 = int_to_ptr.vmem [resolvable:$true] %s149
          %152 = dma.vmem_to_smem %s150, 16, [#allocation3], [#allocation6]
        $region16: #{tpu_custom_call.1} parent=11 // pred_fallthru
          _
        // Predicated region
        $region17: #{tpu_custom_call.1} parent=11 // pred_check
          %p153 = pneg %p71
        $region18: #{tpu_custom_call.1} parent=11 // pred_check_branch
          %155 = sbr.rel (%p153) target = $region20
        $region19: #{tpu_custom_call.1} parent=11 // pred_region
          _
        $region20: #{tpu_custom_call.1} parent=11 // pred_fallthru
          _
      $region12: #{tpu_custom_call.1} parent=5 // pred_fallthru
        _
      %p156 = scmp.lt.s32.totalorder %s17, 2
      // Predicated region
      $region21: #{tpu_custom_call.1} parent=5 // pred_check
        %p157 = pneg %p156
      $region22: #{tpu_custom_call.1} parent=5 // pred_check_branch
        %159 = sbr.rel (%p157) target = $region24
      $region23: #{tpu_custom_call.1} parent=5 // pred_region
        // Predicated region
        $region25: #{tpu_custom_call.1} parent=23 // pred_check
          %p160 = pneg %p93
        $region26: #{tpu_custom_call.1} parent=23 // pred_check_branch
          %162 = sbr.rel (%p160) target = $region28
        $region27: #{tpu_custom_call.1} parent=23 // pred_region
          %s163 = sand.u32 %s83, 1
          %s164 = scalar_lea.sflag [#allocation4], %s163
          %s165 = sand.u32 %s83, 1
          %s166 = smul.addr %s165, 8
          %s167 = scalar_lea.vmem [#allocation7], %s166
          %s168 = smul.u32 2, %s25
          %s170 = ssub.s32 128, 128
          %171 = vsyncadd %s164, %s170
          %s172 = smul.addr %s24, 2
          %s173 = sadd.s32 %s168, %s172
          %s174 = smul.addr %s173, 64
          %s175 = scalar_lea.hbm %s2, %s174
          %s177 = sshll.u32 %s167, 4
          %s178 = int_to_ptr.vmem [resolvable:$true] %s177
          %180 = dma.hbm_to_vmem [thread:$0]  %s175, 128, %s178, %s164
        $region28: #{tpu_custom_call.1} parent=23 // pred_fallthru
          _
      $region24: #{tpu_custom_call.1} parent=5 // pred_fallthru
        _
      %p181 = scmp.le.s32.totalorder 1, %s17
      %p182 = scmp.lt.s32.totalorder %s17, 3
      %p183 = pnand %p181, %p182
      %p184 = pneg %p183
      // Predicated region
      $region29: #{tpu_custom_call.1} parent=5 // pred_check
        _
      $region30: #{tpu_custom_call.1} parent=5 // pred_check_branch
        %186 = sbr.rel (%p183) target = $region32
      $region31: #{tpu_custom_call.1} parent=5 // pred_region
        %s187 = ssub.s32 %s17, 1
        // Predicated region
        $region33: #{tpu_custom_call.1} parent=31 // pred_check
          %p188 = pneg %p50
        $region34: #{tpu_custom_call.1} parent=31 // pred_check_branch
          %190 = sbr.rel (%p188) target = $region36
        $region35: #{tpu_custom_call.1} parent=31 // pred_region
          %191 = dma.done [#allocation6], 16
        $region36: #{tpu_custom_call.1} parent=31 // pred_fallthru
          _
        %s192 = sand.u32 %s86, 1
        %s193 = scalar_lea.sflag [#allocation4], %s192
        %s194 = sand.u32 %s86, 1
        %s195 = smul.addr %s194, 8
        %s196 = scalar_lea.vmem [#allocation7], %s195
        // Predicated region
        $region37: #{tpu_custom_call.1} parent=31 // pred_check
          %p197 = pneg %p99
        $region38: #{tpu_custom_call.1} parent=31 // pred_check_branch
          %199 = sbr.rel (%p197) target = $region40
        $region39: #{tpu_custom_call.1} parent=31 // pred_region
          %200 = dma.done %s193, 128
        $region40: #{tpu_custom_call.1} parent=31 // pred_fallthru
          _
        %201 = sfence
        %p202 = pneg %p50
        %p203 = pneg %p47
        %p204 = pneg %p71
        %p205 = pneg %p68
        %s206 = sand.u32 %s86, 1
        %s207 = scalar_lea.sflag [#allocation4], %s206
        %s208 = sand.u32 %s86, 1
        %s209 = smul.addr %s208, 8
        %s210 = scalar_lea.vmem [#allocation7], %s209
        %p211 = pneg %p99
        %p212 = pneg %p96
        %p213 = pneg %p127
        %p214 = pneg %p124
        %s215 = sand.u32 %s114, 1
        %s216 = scalar_lea.sflag [#allocation5], %s215
        %s217 = sand.u32 %s114, 1
        %s218 = smul.addr %s217, 2
        %s219 = scalar_lea.vmem [#allocation8], %s218
        %s220 = smul.u32 2, %s27
        %s221 = smul.u32 2, %s27
        %s222 = sld [smem:[#allocation3]]
        %v223 = vld [vmem:[%s196] ss:$4 sm:$0x3]
        %v224 = vstv %s222
        %v225 = vmul.f32 %v224, %v223
        %s226 = sld [smem:[#allocation3 + $0x1]]
        %s227 = scalar_lea.vmem %s196, 1 [#allocation7]
        %v228 = vld [vmem:[%s227] ss:$4 sm:$0x3]
        %v229 = vstv %s226
        %v230 = vmul.f32 %v229, %v228
        %v231 = vadd.f32 %v225, %v230
        %s232 = sld [smem:[#allocation3 + $0x2]]
        %s233 = scalar_lea.vmem %s196, 2 [#allocation7]
        %v234 = vld [vmem:[%s233] ss:$4 sm:$0x3]
        %v235 = vstv %s232
        %v236 = vmul.f32 %v235, %v234
        %v237 = vadd.f32 %v231, %v236
        %s238 = sld [smem:[#allocation3 + $0x3]]
        %s239 = scalar_lea.vmem %s196, 3 [#allocation7]
        %v240 = vld [vmem:[%s239] ss:$4 sm:$0x3]
        %v241 = vstv %s238
        %v242 = vmul.f32 %v241, %v240
        %v243 = vadd.f32 %v237, %v242
        %s244 = sld [smem:[#allocation2]]
        %v245 = vstv %s244
        %v246 = vadd.f32 %v243, %v245
        %v247 = vtanh.pop %v246
        %v248 = vmul.f32 %v247, 3.1415927
        %v249 = vlaneseq
        %vm250 = vcmp.ge.s32.totalorder %v249, 0
        %vm251 = vcmp.lt.s32.totalorder %v249, 256
        %vm252 = vmand %vm250, %vm251
        %253 = vst.msk [vmem:[%s219] sm:$0x3] %vm252, %v248
        %s254 = sand.u32 %s114, 1
        %s255 = scalar_lea.sflag [#allocation5], %s254
        %s256 = sand.u32 %s114, 1
        %s257 = smul.addr %s256, 2
        %s258 = scalar_lea.vmem [#allocation8], %s257
        // Predicated region
        $region41: #{tpu_custom_call.1} parent=31 // pred_check
          %p259 = pneg %p124
        $region42: #{tpu_custom_call.1} parent=31 // pred_check_branch
          %261 = sbr.rel (%p259) target = $region44
        $region43: #{tpu_custom_call.1} parent=31 // pred_region
          %s262 = smul.u32 2, %s27
          %s264 = ssub.s32 32, 32
          %265 = vsyncadd %s255, %s264
          %s266 = smul.addr %s26, 2
          %s267 = sadd.s32 %s262, %s266
          %s268 = smul.addr %s267, 16
          %s269 = scalar_lea.hbm %s3, %s268
          %s271 = sshll.u32 %s258, 4
          %s272 = int_to_ptr.vmem [resolvable:$true] %s271
          %274 = dma.vmem_to_hbm [thread:$0]  %s272, 32, %s269, %s255
        $region44: #{tpu_custom_call.1} parent=31 // pred_fallthru
          _
      $region32: #{tpu_custom_call.1} parent=5 // pred_fallthru
        _
      %p275 = scmp.le.s32.totalorder 2, %s17
      // Predicated region
      $region45: #{tpu_custom_call.1} parent=5 // pred_check
        %p276 = pneg %p275
      $region46: #{tpu_custom_call.1} parent=5 // pred_check_branch
        %278 = sbr.rel (%p276) target = $region48
      $region47: #{tpu_custom_call.1} parent=5 // pred_region
        %s279 = ssub.s32 %s17, 2
        // Predicated region
        $region49: #{tpu_custom_call.1} parent=47 // pred_check
          %p280 = pneg %p130
        $region50: #{tpu_custom_call.1} parent=47 // pred_check_branch
          %282 = sbr.rel (%p280) target = $region52
        $region51: #{tpu_custom_call.1} parent=47 // pred_region
          %s283 = sand.u32 %s115, 1
          %s284 = scalar_lea.sflag [#allocation5], %s283
          %s285 = sand.u32 %s115, 1
          %s286 = smul.addr %s285, 2
          %s287 = scalar_lea.vmem [#allocation8], %s286
          %288 = dma.done %s284, 32
        $region52: #{tpu_custom_call.1} parent=47 // pred_fallthru
          _
      $region48: #{tpu_custom_call.1} parent=5 // pred_fallthru
        _
    $region6: #{tpu_custom_call.1} parent=1 // loop_footer
      %s21 = sadd.s32 1, %s17
    $region7: #{tpu_custom_call.1} parent=1 // loop_footer_branch
      %16 = sbr.rel target = $region3
    $region8: #{tpu_custom_call.1} parent=1 // loop_exit
      _
    %289 = vsyncpa [#allocation4], 1
    %s290 = scalar_lea.sflag [#allocation4], 1
    %291 = vsyncpa %s290, 1
    %292 = vsyncpa [#allocation5], 1
    %s293 = scalar_lea.sflag [#allocation5], 1
    %294 = vsyncpa %s293, 1
    %295 = vsyncpa [#allocation6], 1
    %s296 = scalar_lea.sflag [#allocation6], 1
    %297 = vsyncpa %s296, 1

</llo_original>
